<compile_context>
chip_gen: v6e
topology: v6e:2x2x1
jax: 0.10.0
libtpu: 0.0.40
codegen_flags: <defaults>
</compile_context>

<pallas_src>
import functools
import math

import jax
import jax.numpy as jnp
from jax.experimental import pallas as pl
from jax.experimental.pallas import tpu as pltpu

MARGIN = 0.5
SCALE = 30.0
CLAMP_EPS = 1e-7
NORM_EPS = 1e-12          # F.normalize default eps (applied to the L2 norm)
NEG_LARGE = -1e30         # "-inf" stand-in that stays NaN-free under arithmetic

COS_M = math.cos(MARGIN)
SIN_M = math.sin(MARGIN)


def _cdiv(a, b):
    return -(-a // b)


def _round_up(x, m):
    return ((x + m - 1) // m) * m


def _is_v7x():
    """True on a 2-TensorCore (v7x-class) chip; safe fallback elsewhere."""
    try:
        kind = jax.devices()[0].device_kind.lower()
    except Exception:
        return False
    return ("v7" in kind) or ("7x" in kind)


def _arcface_kernel(emb_ref, w_ref, lab_ref, out_ref,
                    m_ref, l_ref, t_ref, *, c_total, tc, mask_pad):
    j = pl.program_id(1)
    nj = pl.num_programs(1)

    # --- once per batch tile: reset the online-logsumexp accumulators --------
    @pl.when(j == 0)
    def _init():
        m_ref[...] = jnp.full_like(m_ref, NEG_LARGE)
        l_ref[...] = jnp.zeros_like(l_ref)
        t_ref[...] = jnp.zeros_like(t_ref)

    # --- cosine similarities: pre-normalized bf16 operands, f32 accumulation -
    # standard (tb,E)@(E,tc) contraction -> K-major RHS, no in-kernel transpose
    cos = jax.lax.dot_general(
        emb_ref[...], w_ref[...],
        dimension_numbers=(((1,), (0,)), ((), ())),
        preferred_element_type=jnp.float32)                      # (TB, TC)
    cos = jnp.clip(cos, -1.0 + CLAMP_EPS, 1.0 - CLAMP_EPS)

    labels = lab_ref[...]                                        # (TB, 1) int32
    col = jax.lax.broadcasted_iota(jnp.int32, cos.shape, 1) + j * tc
    is_tgt = col == labels                                       # (TB, TC)

    # Exclude the target column (margin logit handled separately below) and --
    # only when class padding exists at all (static flag) -- the padded columns
    # from the plain-logit sum.
    drop = is_tgt
    if mask_pad:
        drop = drop | (col >= c_total)
    s = jnp.where(drop, NEG_LARGE, SCALE * cos)                  # plain scaled logits

    # ArcFace margin only on the per-row target logit (if it lives in this tile)
    lo = j * tc
    in_tile = (labels >= lo) & (labels < lo + tc)                # (TB, 1)
    tgt_cos = jnp.sum(jnp.where(is_tgt, cos, 0.0), axis=1, keepdims=True)
    sin_t = jnp.sqrt(jnp.maximum(1.0 - tgt_cos * tgt_cos, 0.0))
    tgt_marg = SCALE * (tgt_cos * COS_M - sin_t * SIN_M)  # s * cos(acos(c) + m)

    # --- online logsumexp over {non-target plain logits} U {target margin logit}
    m_prev = m_ref[...]
    tile_max = jnp.max(s, axis=1, keepdims=True)
    tile_max = jnp.maximum(tile_max, jnp.where(in_tile, tgt_marg, NEG_LARGE))
    m_new = jnp.maximum(m_prev, tile_max)
    alpha = jnp.exp(m_prev - m_new)
    p_sum = jnp.sum(jnp.exp(s - m_new), axis=1, keepdims=True)
    l_ref[...] = (alpha * l_ref[...] + p_sum
                  + jnp.where(in_tile, jnp.exp(tgt_marg - m_new), 0.0))
    t_ref[...] = t_ref[...] + jnp.where(in_tile, tgt_marg, 0.0)
    m_ref[...] = m_new

    # --- finalize: per-row cross-entropy = logsumexp - target(margin) logit --
    @pl.when(j == nj - 1)
    def _finalize():
        out_ref[...] = (m_ref[...] + jnp.log(l_ref[...])) - t_ref[...]


def arcface_loss(embeddings, weight, labels, *, tb=512, tc=1024):
    """ArcFace cross-entropy. embeddings: (B, E), weight: (C, E), labels: (B,)."""
    B, E = embeddings.shape
    C, E2 = weight.shape
    assert E == E2

    # --- normalize once in f32 (matches F.normalize), then quantize to bf16 --
    emb = embeddings.astype(jnp.float32)
    emb = emb / jnp.maximum(jnp.linalg.norm(emb, axis=1, keepdims=True), NORM_EPS)
    w = weight.astype(jnp.float32)
    w = w / jnp.maximum(jnp.linalg.norm(w, axis=1, keepdims=True), NORM_EPS)

    # --- tiling / padding plan ------------------------------------------------
    e_pad = _round_up(E, 128)                      # lane / MXU contraction dim

    b_pad = _round_up(B, 8)
    if b_pad <= tb:
        tb = b_pad
        # v7x has two TensorCores: expose >=2 batch tiles so the "parallel"
        # batch grid axis actually splits across them (no-op on v5e/v6e).
        if _is_v7x() and b_pad >= 16:
            tb = _round_up(_cdiv(b_pad, 2), 8)
            b_pad = 2 * tb
    else:
        n_bt = _cdiv(b_pad, tb)
        tb = _round_up(_cdiv(b_pad, n_bt), 8)      # rebalance: minimal padded rows
        b_pad = n_bt * tb

    c_pad = _round_up(C, 8)
    if c_pad <= tc:
        tc = c_pad                                  # single class tile (full dim)
    else:
        n_ct = _cdiv(c_pad, tc)
        tc = _round_up(_cdiv(c_pad, n_ct), 128)     # blocked lane dim: 128-multiple
        c_pad = n_ct * tc

    # embeddings: pre-normalized bf16, zero-padded rows / lanes
    emb_p = jnp.zeros((b_pad, e_pad), jnp.bfloat16).at[:B, :E].set(
        emb.astype(jnp.bfloat16))
    # weight: pre-normalized, pre-transposed to (E, C) -> MXU-friendly K-major RHS
    w_p = jnp.zeros((e_pad, c_pad), jnp.bfloat16).at[:E, :C].set(
        w.T.astype(jnp.bfloat16))
    lab_p = jnp.zeros((b_pad, 1), jnp.int32).at[:B, 0].set(labels.astype(jnp.int32))

    grid = (b_pad // tb, c_pad // tc)
    kernel = functools.partial(_arcface_kernel,
                               c_total=C, tc=tc, mask_pad=(c_pad > C))

    # VMEM budget from the actual footprint (double-buffered bf16 operand tiles
    # + f32 logits / exp temporaries), clamped so it stays legal on v7x (64 MiB).
    vmem_est = (2 * tb * e_pad * 2          # embeddings tile x2 (bf16)
                + 2 * e_pad * tc * 2        # weight tile x2 (bf16)
                + 6 * tb * tc * 4           # cos / exp / select temporaries (f32)
                + 32 * tb * 4)              # labels, out, accumulators
    vmem_limit = int(min(max(int(vmem_est * 1.25), 32 * 1024 * 1024),
                         64 * 1024 * 1024))

    per_row = pl.pallas_call(
        kernel,
        out_shape=jax.ShapeDtypeStruct((b_pad, 1), jnp.float32),
        grid_spec=pltpu.PrefetchScalarGridSpec(
            num_scalar_prefetch=0,
            grid=grid,
            in_specs=[
                pl.BlockSpec((tb, e_pad), lambda i, j: (i, 0)),   # embeddings
                pl.BlockSpec((e_pad, tc), lambda i, j: (0, j)),   # weight (streamed)
                pl.BlockSpec((tb, 1), lambda i, j: (i, 0)),       # labels
            ],
            out_specs=pl.BlockSpec((tb, 1), lambda i, j: (i, 0)),
            scratch_shapes=[
                pltpu.VMEM((tb, 1), jnp.float32),    # running max
                pltpu.VMEM((tb, 1), jnp.float32),    # running sumexp
                pltpu.VMEM((tb, 1), jnp.float32),    # margin-applied target logit
            ],
        ),
        compiler_params=pltpu.CompilerParams(
            dimension_semantics=("parallel", "arbitrary"),
            vmem_limit_bytes=vmem_limit,
        ),
    )(emb_p, w_p, lab_p)

    # Final mean over the real batch rows kept in JAX so the batch-tile grid axis
    # can stay megacore-parallel without a shared scalar output.
    return jnp.sum(per_row[:B, 0]) / B


def xavier_uniform(key, shape):
    # torch.nn.init.xavier_uniform_ on (num_classes, embedding_size):
    # fan_in = embedding_size, fan_out = num_classes
    fan_out, fan_in = shape
    bound = math.sqrt(6.0 / (fan_in + fan_out))
    return jax.random.uniform(key, shape, jnp.float32, -bound, bound)


if __name__ == "__main__":
    embedding_size = 32
    num_classes = 16
    batch = 8

    key = jax.random.PRNGKey(0)
    k_emb, k_w, k_lab = jax.random.split(key, 3)

    embeddings = jax.random.normal(k_emb, (batch, embedding_size), jnp.float32)
    weight = xavier_uniform(k_w, (num_classes, embedding_size))
    labels = jax.random.randint(k_lab, (batch,), 0, num_classes, jnp.int32)

    loss = arcface_loss(embeddings, weight, labels)
    jax.block_until_ready(loss)
    print("KERNEL_OK")
</pallas_src>

<mosaic_0001>
module attributes {stable_mosaic.version = 11 : i64} {
  func.func @_arcface_kernel(%arg0: i32, %arg1: i32, %arg2: memref<8x128xbf16, #tpu.memory_space<vmem>>, %arg3: memref<128x16xbf16, #tpu.memory_space<vmem>>, %arg4: memref<8x1xi32, #tpu.memory_space<vmem>>, %arg5: memref<8x1xf32, #tpu.memory_space<vmem>>, %arg6: memref<8x1xf32, #tpu.memory_space<vmem>>, %arg7: memref<8x1xf32, #tpu.memory_space<vmem>>, %arg8: memref<8x1xf32, #tpu.memory_space<vmem>>) attributes {dimension_semantics = [#tpu.dimension_semantics<parallel>, #tpu.dimension_semantics<arbitrary>], iteration_bounds = array<i64: 1, 1>, scalar_prefetch = 0 : i64, scratch_operands = 3 : i64, tpu.core_type = #tpu.core_type<tc>, window_params = [{transform_indices = @transform_0, window_bounds = array<i64: 8, 128>}, {transform_indices = @transform_1, window_bounds = array<i64: 128, 16>}, {transform_indices = @transform_2, window_bounds = array<i64: 8, 1>}, {transform_indices = @transform_3, window_bounds = array<i64: 8, 1>}]} {
    %c0_i32 = arith.constant 0 : i32
    %0 = arith.cmpi eq, %arg1, %c0_i32 : i32
    %1 = arith.extui %0 : i1 to i32
    %c0_i32_0 = arith.constant 0 : i32
    %2 = arith.cmpi ne, %1, %c0_i32_0 : i32
    scf.if %2 {
      %cst_38 = arith.constant -1.000000e+30 : f32
      %77 = vector.broadcast %cst_38 : f32 to vector<8x1xf32>
      %c0_39 = arith.constant 0 : index
      %c0_40 = arith.constant 0 : index
      %78 = vector.load %arg6[%c0_39, %c0_40] : memref<8x1xf32, #tpu.memory_space<vmem>>, vector<8x1xf32>
      tpu.vector_store %arg6[%c0_39, %c0_40], %77 {strides = array<i32>} : memref<8x1xf32, #tpu.memory_space<vmem>>, vector<8x1xf32>,
      %cst_41 = arith.constant 0.000000e+00 : f32
      %79 = vector.broadcast %cst_41 : f32 to vector<8x1xf32>
      %c0_42 = arith.constant 0 : index
      %c0_43 = arith.constant 0 : index
      %80 = vector.load %arg7[%c0_42, %c0_43] : memref<8x1xf32, #tpu.memory_space<vmem>>, vector<8x1xf32>
      tpu.vector_store %arg7[%c0_42, %c0_43], %79 {strides = array<i32>} : memref<8x1xf32, #tpu.memory_space<vmem>>, vector<8x1xf32>,
      %cst_44 = arith.constant 0.000000e+00 : f32
      %81 = vector.broadcast %cst_44 : f32 to vector<8x1xf32>
      %c0_45 = arith.constant 0 : index
      %c0_46 = arith.constant 0 : index
      %82 = vector.load %arg8[%c0_45, %c0_46] : memref<8x1xf32, #tpu.memory_space<vmem>>, vector<8x1xf32>
      tpu.vector_store %arg8[%c0_45, %c0_46], %81 {strides = array<i32>} : memref<8x1xf32, #tpu.memory_space<vmem>>, vector<8x1xf32>,
    } else {
    }
    %c0 = arith.constant 0 : index
    %c0_1 = arith.constant 0 : index
    %3 = vector.load %arg2[%c0, %c0_1] : memref<8x128xbf16, #tpu.memory_space<vmem>>, vector<8x128xbf16>
    %c0_2 = arith.constant 0 : index
    %c0_3 = arith.constant 0 : index
    %4 = vector.load %arg3[%c0_2, %c0_3] : memref<128x16xbf16, #tpu.memory_space<vmem>>, vector<128x16xbf16>
    %cst = arith.constant dense<0.000000e+00> : vector<8x16xf32>
    %5 = tpu.matmul %3, %4, %cst {dimension_numbers = #tpu.dot_dimension_numbers<[1], [0], [0], [1], [0, 0, 1, 1], [], []>} : vector<8x128xbf16>, vector<128x16xbf16>, vector<8x16xf32> -> vector<8x16xf32>
    %cst_4 = arith.constant -0.99999988 : f32
    %cst_5 = arith.constant 0.99999988 : f32
    %6 = vector.broadcast %cst_4 : f32 to vector<8x16xf32>
    %7 = arith.maximumf %6, %5 : vector<8x16xf32>
    %8 = vector.broadcast %cst_5 : f32 to vector<8x16xf32>
    %9 = arith.minimumf %8, %7 : vector<8x16xf32>
    %c0_6 = arith.constant 0 : index
    %c0_7 = arith.constant 0 : index
    %10 = vector.load %arg4[%c0_6, %c0_7] : memref<8x1xi32, #tpu.memory_space<vmem>>, vector<8x1xi32>
    %11 = tpu.iota {dimensions = array<i32: 1>} : vector<8x16xi32>
    %c16_i32 = arith.constant 16 : i32
    %12 = arith.muli %arg1, %c16_i32 : i32
    %13 = vector.broadcast %12 : i32 to vector<8x16xi32>
    %14 = arith.addi %11, %13 : vector<8x16xi32>
    %15 = vector.broadcast %10 : vector<8x1xi32> to vector<8x16xi32>
    %16 = arith.cmpi eq, %14, %15 : vector<8x16xi32>
    %cst_8 = arith.constant 3.000000e+01 : f32
    %17 = vector.broadcast %cst_8 : f32 to vector<8x16xf32>
    %18 = arith.mulf %17, %9 : vector<8x16xf32>
    %cst_9 = arith.constant -1.000000e+30 : f32
    %19 = vector.broadcast %cst_9 : f32 to vector<8x16xf32>
    %20 = arith.select %16, %19, %18 : vector<8x16xi1>, vector<8x16xf32>
    %c16_i32_10 = arith.constant 16 : i32
    %21 = arith.muli %arg1, %c16_i32_10 : i32
    %22 = vector.broadcast %21 : i32 to vector<8x1xi32>
    %23 = arith.cmpi sge, %10, %22 : vector<8x1xi32>
    %c16_i32_11 = arith.constant 16 : i32
    %24 = arith.addi %21, %c16_i32_11 : i32
    %25 = vector.broadcast %24 : i32 to vector<8x1xi32>
    %26 = arith.cmpi slt, %10, %25 : vector<8x1xi32>
    %27 = arith.andi %23, %26 : vector<8x1xi1>
    %cst_12 = arith.constant 0.000000e+00 : f32
    %28 = vector.broadcast %cst_12 : f32 to vector<8x16xf32>
    %29 = arith.select %16, %9, %28 : vector<8x16xi1>, vector<8x16xf32>
    %cst_13 = arith.constant dense<0.000000e+00> : vector<8xf32>
    %30 = vector.multi_reduction <add>, %29, %cst_13 [1] : vector<8x16xf32> to vector<8xf32>
    %31 = vector.shape_cast %30 : vector<8xf32> to vector<8x1xf32>
    %32 = arith.mulf %31, %31 : vector<8x1xf32>
    %cst_14 = arith.constant 1.000000e+00 : f32
    %33 = vector.broadcast %cst_14 : f32 to vector<8x1xf32>
    %34 = arith.subf %33, %32 : vector<8x1xf32>
    %cst_15 = arith.constant 0.000000e+00 : f32
    %35 = vector.broadcast %cst_15 : f32 to vector<8x1xf32>
    %36 = arith.maximumf %34, %35 : vector<8x1xf32>
    %37 = math.sqrt %36 : vector<8x1xf32>
    %cst_16 = arith.constant 0.87758255 : f32
    %38 = vector.broadcast %cst_16 : f32 to vector<8x1xf32>
    %39 = arith.mulf %31, %38 : vector<8x1xf32>
    %cst_17 = arith.constant 0.47942555 : f32
    %40 = vector.broadcast %cst_17 : f32 to vector<8x1xf32>
    %41 = arith.mulf %37, %40 : vector<8x1xf32>
    %42 = arith.subf %39, %41 : vector<8x1xf32>
    %cst_18 = arith.constant 3.000000e+01 : f32
    %43 = vector.broadcast %cst_18 : f32 to vector<8x1xf32>
    %44 = arith.mulf %43, %42 : vector<8x1xf32>
    %c0_19 = arith.constant 0 : index
    %c0_20 = arith.constant 0 : index
    %45 = vector.load %arg6[%c0_19, %c0_20] : memref<8x1xf32, #tpu.memory_space<vmem>>, vector<8x1xf32>
    %cst_21 = arith.constant dense<0xFF800000> : vector<8xf32>
    %46 = vector.multi_reduction <maximumf>, %20, %cst_21 [1] : vector<8x16xf32> to vector<8xf32>
    %47 = vector.shape_cast %46 : vector<8xf32> to vector<8x1xf32>
    %cst_22 = arith.constant -1.000000e+30 : f32
    %48 = vector.broadcast %cst_22 : f32 to vector<8x1xf32>
    %49 = arith.select %27, %44, %48 : vector<8x1xi1>, vector<8x1xf32>
    %50 = arith.maximumf %47, %49 : vector<8x1xf32>
    %51 = arith.maximumf %45, %50 : vector<8x1xf32>
    %52 = arith.subf %45, %51 : vector<8x1xf32>
    %53 = math.exp %52 : vector<8x1xf32>
    %54 = vector.broadcast %51 : vector<8x1xf32> to vector<8x16xf32>
    %55 = arith.subf %20, %54 : vector<8x16xf32>
    %56 = math.exp %55 : vector<8x16xf32>
    %cst_23 = arith.constant dense<0.000000e+00> : vector<8xf32>
    %57 = vector.multi_reduction <add>, %56, %cst_23 [1] : vector<8x16xf32> to vector<8xf32>
    %58 = vector.shape_cast %57 : vector<8xf32> to vector<8x1xf32>
    %c0_24 = arith.constant 0 : index
    %c0_25 = arith.constant 0 : index
    %59 = vector.load %arg7[%c0_24, %c0_25] : memref<8x1xf32, #tpu.memory_space<vmem>>, vector<8x1xf32>
    %60 = arith.mulf %53, %59 : vector<8x1xf32>
    %61 = arith.addf %60, %58 : vector<8x1xf32>
    %62 = arith.subf %44, %51 : vector<8x1xf32>
    %63 = math.exp %62 : vector<8x1xf32>
    %cst_26 = arith.constant 0.000000e+00 : f32
    %64 = vector.broadcast %cst_26 : f32 to vector<8x1xf32>
    %65 = arith.select %27, %63, %64 : vector<8x1xi1>, vector<8x1xf32>
    %66 = arith.addf %61, %65 : vector<8x1xf32>
    %c0_27 = arith.constant 0 : index
    %c0_28 = arith.constant 0 : index
    %67 = vector.load %arg7[%c0_27, %c0_28] : memref<8x1xf32, #tpu.memory_space<vmem>>, vector<8x1xf32>
    tpu.vector_store %arg7[%c0_27, %c0_28], %66 {strides = array<i32>} : memref<8x1xf32, #tpu.memory_space<vmem>>, vector<8x1xf32>,
    %c0_29 = arith.constant 0 : index
    %c0_30 = arith.constant 0 : index
    %68 = vector.load %arg8[%c0_29, %c0_30] : memref<8x1xf32, #tpu.memory_space<vmem>>, vector<8x1xf32>
    %cst_31 = arith.constant 0.000000e+00 : f32
    %69 = vector.broadcast %cst_31 : f32 to vector<8x1xf32>
    %70 = arith.select %27, %44, %69 : vector<8x1xi1>, vector<8x1xf32>
    %71 = arith.addf %68, %70 : vector<8x1xf32>
    %c0_32 = arith.constant 0 : index
    %c0_33 = arith.constant 0 : index
    %72 = vector.load %arg8[%c0_32, %c0_33] : memref<8x1xf32, #tpu.memory_space<vmem>>, vector<8x1xf32>
    tpu.vector_store %arg8[%c0_32, %c0_33], %71 {strides = array<i32>} : memref<8x1xf32, #tpu.memory_space<vmem>>, vector<8x1xf32>,
    %c0_34 = arith.constant 0 : index
    %c0_35 = arith.constant 0 : index
    %73 = vector.load %arg6[%c0_34, %c0_35] : memref<8x1xf32, #tpu.memory_space<vmem>>, vector<8x1xf32>
    tpu.vector_store %arg6[%c0_34, %c0_35], %51 {strides = array<i32>} : memref<8x1xf32, #tpu.memory_space<vmem>>, vector<8x1xf32>,
    %c0_i32_36 = arith.constant 0 : i32
    %74 = arith.cmpi eq, %arg1, %c0_i32_36 : i32
    %75 = arith.extui %74 : i1 to i32
    %c0_i32_37 = arith.constant 0 : i32
    %76 = arith.cmpi ne, %75, %c0_i32_37 : i32
    scf.if %76 {
      %c0_38 = arith.constant 0 : index
      %c0_39 = arith.constant 0 : index
      %77 = vector.load %arg6[%c0_38, %c0_39] : memref<8x1xf32, #tpu.memory_space<vmem>>, vector<8x1xf32>
      %c0_40 = arith.constant 0 : index
      %c0_41 = arith.constant 0 : index
      %78 = vector.load %arg7[%c0_40, %c0_41] : memref<8x1xf32, #tpu.memory_space<vmem>>, vector<8x1xf32>
      %79 = math.log %78 : vector<8x1xf32>
      %80 = arith.addf %77, %79 : vector<8x1xf32>
      %c0_42 = arith.constant 0 : index
      %c0_43 = arith.constant 0 : index
      %81 = vector.load %arg8[%c0_42, %c0_43] : memref<8x1xf32, #tpu.memory_space<vmem>>, vector<8x1xf32>
      %82 = arith.subf %80, %81 : vector<8x1xf32>
      %c0_44 = arith.constant 0 : index
      %c0_45 = arith.constant 0 : index
      %83 = vector.load %arg5[%c0_44, %c0_45] : memref<8x1xf32, #tpu.memory_space<vmem>>, vector<8x1xf32>
      tpu.vector_store %arg5[%c0_44, %c0_45], %82 {strides = array<i32>} : memref<8x1xf32, #tpu.memory_space<vmem>>, vector<8x1xf32>,
    } else {
    }
    return
  }
  func.func @transform_0(%arg0: i32, %arg1: i32) -> (i32, i32) {
    %c0_i32 = arith.constant 0 : i32
    %c0_i32_0 = arith.constant 0 : i32
    return %arg0, %c0_i32 : i32, i32
  }
  func.func @transform_1(%arg0: i32, %arg1: i32) -> (i32, i32) {
    %c0_i32 = arith.constant 0 : i32
    %c0_i32_0 = arith.constant 0 : i32
    return %c0_i32, %arg1 : i32, i32
  }
  func.func @transform_2(%arg0: i32, %arg1: i32) -> (i32, i32) {
    %c0_i32 = arith.constant 0 : i32
    %c0_i32_0 = arith.constant 0 : i32
    return %arg0, %c0_i32 : i32, i32
  }
  func.func @transform_3(%arg0: i32, %arg1: i32) -> (i32, i32) {
    %c0_i32 = arith.constant 0 : i32
    %c0_i32_0 = arith.constant 0 : i32
    return %arg0, %c0_i32 : i32, i32
  }
}

</mosaic_0001>

<llo_original>
// kernel: tpu_custom_call.1
$region0: #{tpu_custom_call.1}
  #allocation0 [shape = 'u32[]', space=smem, size = 0x4, offset = 0x4, fixed_abs, tag = 'smem constant byte address 0x4 - core index']
  #allocation1 [shape = 'u32[144,128]{1,0:T(1,128)}', space=vmem, size = 0x12000, scoped, tag = 'internal scratch']
  #allocation2 [shape = 'f32[8,1]{1,0:T(8,128)}', space=vmem, size = 0x1000, scoped, tag = 'scratch operand']
  #allocation3 [shape = 'f32[8,1]{1,0:T(8,128)}', space=vmem, size = 0x1000, scoped, tag = 'scratch operand']
  #allocation4 [shape = 'f32[8,1]{1,0:T(8,128)}', space=vmem, size = 0x1000, scoped, tag = 'scratch operand']
  %s0 = inlined_call_operand.vmem [shape: bf16[8,128], index: 0, kind: input, shape index: {}]
  %s1 = inlined_call_operand.vmem [shape: bf16[128,16], index: 1, kind: input, shape index: {}]
  %s2 = inlined_call_operand.vmem [shape: s32[8,1], index: 2, kind: input, shape index: {}]
  %s3 = inlined_call_operand.vmem [shape: f32[8,1], index: 3, kind: output, shape index: {}]
  %s4 = sld [smem:[#allocation0]]
  $region30: #{tpu_custom_call.1} parent=0
    _
  %s6 = ssub.s32 1, %s4
  %s7 = scalar_select 0, %s6, %s4
  // Predicated region
  $region2: #{tpu_custom_call.1} parent=0 // pred_check
    _
  $region3: #{tpu_custom_call.1} parent=0 // pred_check_branch
    %9 = sbr.rel (0) target = $region5
  $region4: #{tpu_custom_call.1} parent=0 // pred_region
    _
  $region5: #{tpu_custom_call.1} parent=0 // pred_fallthru
    _
  // Predicated region
  $region6: #{tpu_custom_call.1} parent=0 // pred_check
    _
  $region7: #{tpu_custom_call.1} parent=0 // pred_check_branch
    %11 = sbr.rel (0) target = $region9
  $region8: #{tpu_custom_call.1} parent=0 // pred_region
    _
  $region9: #{tpu_custom_call.1} parent=0 // pred_fallthru
    _
  // Predicated region
  $region10: #{tpu_custom_call.1} parent=0 // pred_check
    _
  $region11: #{tpu_custom_call.1} parent=0 // pred_check_branch
    %13 = sbr.rel (0) target = $region13
  $region12: #{tpu_custom_call.1} parent=0 // pred_region
    _
  $region13: #{tpu_custom_call.1} parent=0 // pred_fallthru
    _
  %p15 = scmp.eq.s32.totalorder 0, 0
  // Predicated region
  $region14: #{tpu_custom_call.1} parent=0 // pred_check
    %p16 = pneg %p15
  $region15: #{tpu_custom_call.1} parent=0 // pred_check_branch
    %18 = sbr.rel (%p16) target = $region17
  $region16: #{tpu_custom_call.1} parent=0 // pred_region
    %vm19 = vcmask 7168
    %20 = vst.msk [vmem:[#allocation2] sm:$0xff] %vm19, -1e+30
    %21 = vst.msk [vmem:[#allocation3] sm:$0xff] %vm19, 0.0
    %22 = vst.msk [vmem:[#allocation4] sm:$0xff] %vm19, 0.0
  $region17: #{tpu_custom_call.1} parent=0 // pred_fallthru
    _
  %v23 = vld [vmem:[%s0] sm:$0xf]
  %v24 = vld [vmem:[%s1] sm:$0xf]
  %v25 = vld [vmem:[%s1 + $0x4] sm:$0xf]
  %v26 = vld [vmem:[%s1 + $0x8] sm:$0xf]
  %v27 = vld [vmem:[%s1 + $0xc] sm:$0xf]
  %v28 = vld [vmem:[%s1 + $0x10] sm:$0xf]
  %v29 = vld [vmem:[%s1 + $0x14] sm:$0xf]
  %v30 = vld [vmem:[%s1 + $0x18] sm:$0xf]
  %v31 = vld [vmem:[%s1 + $0x1c] sm:$0xf]
  %v32 = vld [vmem:[%s1 + $0x20] sm:$0xf]
  %v33 = vld [vmem:[%s1 + $0x24] sm:$0xf]
  %v34 = vld [vmem:[%s1 + $0x28] sm:$0xf]
  %v35 = vld [vmem:[%s1 + $0x2c] sm:$0xf]
  %v36 = vld [vmem:[%s1 + $0x30] sm:$0xf]
  %v37 = vld [vmem:[%s1 + $0x34] sm:$0xf]
  %v38 = vld [vmem:[%s1 + $0x38] sm:$0xf]
  %v39 = vld [vmem:[%s1 + $0x3c] sm:$0xf]
  %v56 = vunpack.c.l.b16 %v24
  %v57 = vunpack.c.l.b16 %v25
  %v58 = vunpack.c.l.b16 %v26
  %v59 = vunpack.c.l.b16 %v27
  %v60 = vunpack.c.l.b16 %v28
  %v61 = vunpack.c.l.b16 %v29
  %v62 = vunpack.c.l.b16 %v30
  %v63 = vunpack.c.l.b16 %v31
  %v64 = vunpack.c.l.b16 %v32
  %v65 = vunpack.c.l.b16 %v33
  %v66 = vunpack.c.l.b16 %v34
  %v67 = vunpack.c.l.b16 %v35
  %v68 = vunpack.c.l.b16 %v36
  %v69 = vunpack.c.l.b16 %v37
  %v70 = vunpack.c.l.b16 %v38
  %v71 = vunpack.c.l.b16 %v39
  %v72 = vpack.c.b16 %v57, %v56
  %v73 = vpack.c.b16 %v59, %v58
  %v74 = vpack.c.b16 %v61, %v60
  %v75 = vpack.c.b16 %v63, %v62
  %v76 = vpack.c.b16 %v65, %v64
  %v77 = vpack.c.b16 %v67, %v66
  %v78 = vpack.c.b16 %v69, %v68
  %v79 = vpack.c.b16 %v71, %v70
  %88 = vmatprep.subr.bf16.mxu0 0
  %89 = vmatpush1.bf16.msra.mxu0 %v79
  %90 = vmatprep.subr.bf16.mxu0 0
  %91 = vmatpush1.bf16.msra.mxu0 %v78
  %92 = vmatprep.subr.bf16.mxu0 0
  %93 = vmatpush1.bf16.msra.mxu0 %v77
  %94 = vmatprep.subr.bf16.mxu0 0
  %95 = vmatpush1.bf16.msra.mxu0 %v76
  %96 = vmatprep.subr.bf16.mxu0 0
  %97 = vmatpush1.bf16.msra.mxu0 %v75
  %98 = vmatprep.subr.bf16.mxu0 0
  %99 = vmatpush1.bf16.msra.mxu0 %v74
  %100 = vmatprep.subr.bf16.mxu0 0
  %101 = vmatpush1.bf16.msra.mxu0 %v73
  %102 = vmatprep.subr.bf16.mxu0 0
  %103 = vmatpush1.bf16.msra.mxu0 %v72
  %104 = vmatprep.subr.bf16.mxu0 0
  %105 = vmatpush2.bf16.msra.mxu0 0
  %106 = vmatprep.subr.bf16.mxu0 0
  %107 = vmatpush2.bf16.msra.mxu0 0
  %108 = vmatprep.subr.bf16.mxu0 0
  %109 = vmatpush2.bf16.msra.mxu0 0
  %110 = vmatprep.subr.bf16.mxu0 0
  %111 = vmatpush2.bf16.msra.mxu0 0
  %112 = vmatprep.subr.bf16.mxu0 0
  %113 = vmatpush2.bf16.msra.mxu0 0
  %114 = vmatprep.subr.bf16.mxu0 0
  %115 = vmatpush2.bf16.msra.mxu0 0
  %116 = vmatprep.subr.bf16.mxu0 0
  %117 = vmatpush2.bf16.msra.mxu0 0
  %118 = vmatprep.subr.bf16.mxu0 0
  %119 = vmatpush2.bf16.msra.mxu0 0
  %120 = vmatprep.mubr.bf16.mxu0 0
  %121 = vmatmul.mubr.bf16.gmra.mxu0 %v23
  %v122 = vpop.f32.mrf.mxu0
  %v123 = vadd.f32 0.0, %v122
  %v124 = vpop.f32.mrf.mxu0
  %v125 = vpop.f32.mrf.mxu0
  %v126 = vpop.f32.mrf.mxu0
  %127 = vdwg.mxu0
  %v128 = vmax.f32 %v123, -0.9999999
  %v129 = vmin.f32 %v128, 0.9999999
  %v130 = vld [vmem:[%s2] sm:$0xff]
  %v131 = vlaneseq
  %v132 = vand.u32 %v131, 127
  %s133 = smul.u32 0, 16
  %v134 = vstv %s133
  %v135 = vadd.s32 %v132, %v134
  %136 = vset.pattern.permute.xlu0 0
  %137 = vperm.xlu0 %136, %v130
  %v138 = vpop.permute.xlu0 %137
  %vm139 = vcmp.eq.s32.totalorder %v135, %v138
  %v140 = vmul.f32 %v129, 30.0
  %v141 = vsel %vm139, -1e+30, %v140
  %vm142 = vcmp.ge.s32.totalorder %v130, %v134
  %s143 = sadd.s32 %s133, 16
  %v144 = vstv %s143
  %vm145 = vcmp.lt.s32.totalorder %v130, %v144
  %vm146 = vmand %vm142, %vm145
  %v147 = vsel %vm139, %v129, 0.0
  %vm148 = vcmask 130048
  %v149 = vsel %vm148, %v147, 0.0
  %150 = vadd.xlane.f32.xlu0 %v149
  %v151 = vpop.xlane.xlu0 %150
  %v152 = vmul.f32 %v151, %v151
  %v153 = vsub.f32 1.0, %v152
  %v154 = vmax.f32 %v153, 0.0
  %v155 = vrsqrt.pop %v154
  %v156 = vmul.f32 %v154, %v155
  %vm157 = vcmp.eq.f32.partialorder %v154, inf
  %v158 = vsel %vm157, %v154, %v156
  %vm159 = vcmp.eq.f32.partialorder %v154, 0.0
  %v160 = vand.u32 %v154, 2147483648
  %v161 = vsel %vm159, %v160, %v158
  %v162 = vmul.f32 %v151, 0.87758255
  %v163 = vmul.f32 %v161, 0.47942555
  %v164 = vsub.f32 %v162, %v163
  %v165 = vmul.f32 %v164, 30.0
  %v166 = vld [vmem:[#allocation2] sm:$0xff]
  %v167 = vsel %vm148, %v141, -inf
  %168 = vmax.xlane.f32.xlu0 %v167
  %v169 = vpop.xlane.xlu0 %168
  %v170 = vsel %vm146, %v165, -1e+30
  %v171 = vmax.f32 %v169, %v170
  %v172 = vmax.f32 %v166, %v171
  %v173 = vsub.f32 %v166, %v172
  %v174 = vmul.f32 %v173, 1.442695
  %v175 = vpow.pop %v174
  %177 = vset.pattern.permute.xlu0 0
  %178 = vperm.xlu0 %177, %v172
  %v179 = vpop.permute.xlu0 %178
  %v181 = vsub.f32 %v141, %v179
  %v182 = vmul.f32 %v181, 1.442695
  %v183 = vpow.pop %v182
  %v184 = vsel %vm148, %v183, 0.0
  %185 = vadd.xlane.f32.xlu0 %v184
  %v186 = vpop.xlane.xlu0 %185
  %v187 = vld [vmem:[#allocation3] sm:$0xff]
  %v188 = vmul.f32 %v175, %v187
  %v189 = vadd.f32 %v188, %v186
  %v190 = vsub.f32 %v165, %v172
  %v191 = vmul.f32 %v190, 1.442695
  %v192 = vpow.pop %v191
  %v193 = vsel %vm146, %v192, 0.0
  %v194 = vadd.f32 %v189, %v193
  %vm195 = vcmask 7168
  %196 = vst.msk [vmem:[#allocation3] sm:$0xff] %vm195, %v194
  %v197 = vld [vmem:[#allocation4] sm:$0xff]
  %v198 = vsel %vm146, %v165, 0.0
  %v199 = vadd.f32 %v197, %v198
  %200 = vst.msk [vmem:[#allocation4] sm:$0xff] %vm195, %v199
  %201 = vst.msk [vmem:[#allocation2] sm:$0xff] %vm195, %v172
  // Predicated region
  $region18: #{tpu_custom_call.1} parent=0 // pred_check
    %p202 = pneg %p15
  $region19: #{tpu_custom_call.1} parent=0 // pred_check_branch
    %204 = sbr.rel (%p202) target = $region21
  $region20: #{tpu_custom_call.1} parent=0 // pred_region
    %v205 = vld [vmem:[#allocation2] sm:$0xff]
    %v206 = vld [vmem:[#allocation3] sm:$0xff]
    %v207 = vlog2.pop %v206
    %v208 = vmul.f32 %v207, 0.6931472
    %v209 = vadd.f32 %v205, %v208
    %v210 = vld [vmem:[#allocation4] sm:$0xff]
    %v211 = vsub.f32 %v209, %v210
    %212 = vst.msk [vmem:[%s3] sm:$0xff] %vm195, %v211
  $region21: #{tpu_custom_call.1} parent=0 // pred_fallthru
    _
  // Predicated region
  $region22: #{tpu_custom_call.1} parent=0 // pred_check
    _
  $region23: #{tpu_custom_call.1} parent=0 // pred_check_branch
    %214 = sbr.rel (0) target = $region25
  $region24: #{tpu_custom_call.1} parent=0 // pred_region
    _
  $region25: #{tpu_custom_call.1} parent=0 // pred_fallthru
    _
  // Predicated region
  $region26: #{tpu_custom_call.1} parent=0 // pred_check
    _
  $region27: #{tpu_custom_call.1} parent=0 // pred_check_branch
    %216 = sbr.rel (0) target = $region29
  $region28: #{tpu_custom_call.1} parent=0 // pred_region
    _
  $region29: #{tpu_custom_call.1} parent=0 // pred_fallthru
    _

</llo_original>
